<compile_context>
chip_gen: v7x
topology: tpu7x:2x2x1
jax: 0.10.0
libtpu: 0.0.40
codegen_flags: <defaults>
</compile_context>

<pallas_src>
import functools

import jax
import jax.numpy as jnp
from jax.experimental import pallas as pl
from jax.experimental.pallas import tpu as pltpu


_LANE = 128          # lane width (last dim granularity)
_SUBLANE = 8         # f32 sublane granularity (second-to-last dim)
_DEFAULT_TILE_M = 512


def _round_up(n, m):
    return ((n + m - 1) // m) * m


# ----------------------------------------------------------------------------
# In-kernel helpers
# ----------------------------------------------------------------------------
def _mix32(v):
    """splitmix32-style avalanche finalizer on uint32 (VPU-only integer ops)."""
    v = v ^ (v >> jnp.uint32(16))
    v = v * jnp.uint32(0x7FEB352D)
    v = v ^ (v >> jnp.uint32(15))
    v = v * jnp.uint32(0x846CA68B)
    v = v ^ (v >> jnp.uint32(16))
    return v


def _dropout_keep_mask(shape, row_offset, seed_i32, layer, dropout_rate):
    """Bernoulli(1-p) keep mask from a stateless counter-based hash.

    Keyed on (seed, layer, global element index) so the mask is identical
    regardless of row tiling and decorrelated across layers / row tiles.
    """
    rows = jax.lax.broadcasted_iota(jnp.int32, shape, 0)
    cols = jax.lax.broadcasted_iota(jnp.int32, shape, 1)
    flat = (row_offset + rows) * jnp.int32(shape[1]) + cols
    v = flat.astype(jnp.uint32)
    v = v + seed_i32.astype(jnp.uint32) * jnp.uint32(0x9E3779B9)
    v = v + jnp.uint32(layer + 1) * jnp.uint32(0x85EBCA6B)
    bits = _mix32(v)
    # keep iff top-31 bits >= p * 2^31  ->  P(keep) = 1 - p  (signed int compare,
    # no unsigned compare and no int->float conversion needed).
    thresh = min(int(round(float(dropout_rate) * (1 << 31))), (1 << 31) - 1)
    return (bits >> jnp.uint32(1)).astype(jnp.int32) >= jnp.int32(thresh)


# ----------------------------------------------------------------------------
# Kernels
# ----------------------------------------------------------------------------
def fused_prenet_kernel(seed_ref, x_ref, *rest, n_layers, dropout_rate, tile_m):
    """All prenet layers fused: h = dropout(relu(h @ W_l + b_l)) for l in 0..N-1.

    rest = (w0, b0, w1, b1, ..., o_ref).  Weights are bf16, bias f32, output f32.
    """
    o_ref = rest[-1]
    wb_refs = rest[:-1]
    seed = seed_ref[0]
    row0 = pl.program_id(0) * tile_m
    scale = float(1.0 / (1.0 - dropout_rate)) if dropout_rate < 1.0 else 0.0

    h = x_ref[...]                                   # (tile_m, d_in_pad) bf16
    for layer in range(n_layers):
        w_ref = wb_refs[2 * layer]
        b_ref = wb_refs[2 * layer + 1]
        y = jnp.dot(h.astype(jnp.bfloat16), w_ref[...],
                    preferred_element_type=jnp.float32)
        y = y + b_ref[...]                           # (1, d_o) broadcast, loaded once
        y = jnp.maximum(y, 0.0)                      # ReLU in f32
        keep = _dropout_keep_mask(y.shape, row0, seed, layer, dropout_rate)
        h = jnp.where(keep, y * scale, 0.0)          # inverted dropout, f32
    o_ref[...] = h.astype(o_ref.dtype)


def dropout_only_kernel(seed_ref, x_ref, o_ref, *, dropout_rate, tile_m):
    """n_layers == 0 path: just (always-on) inverted dropout."""
    seed = seed_ref[0]
    row0 = pl.program_id(0) * tile_m
    scale = float(1.0 / (1.0 - dropout_rate)) if dropout_rate < 1.0 else 0.0
    x = x_ref[...].astype(jnp.float32)
    keep = _dropout_keep_mask(x.shape, row0, seed, 0, dropout_rate)
    o_ref[...] = jnp.where(keep, x * scale, 0.0).astype(o_ref.dtype)


# ----------------------------------------------------------------------------
# Wrapper
# ----------------------------------------------------------------------------
def taco2_prenet_forward(x, weights, biases, dropout_rate, seed=0):
    """x: (B, T, dim_i) f32. weights[i]: (d_in_i, dim_h_o), biases[i]: (dim_h_o,)."""
    b, t, d_i = x.shape
    m = b * t
    n_layers = len(weights)
    seed_arr = jnp.asarray(seed, dtype=jnp.int32).reshape((1,))

    tile_m = min(_DEFAULT_TILE_M, _round_up(m, _SUBLANE))
    m_pad = _round_up(m, tile_m)
    d_i_pad = _round_up(d_i, _LANE)
    x2d = x.reshape(m, d_i)

    if n_layers == 0:
        # pure dropout, dims unchanged (spec requires dim_i == dim_h_o here)
        x_p = jnp.pad(x2d.astype(jnp.float32),
                      ((0, m_pad - m), (0, d_i_pad - d_i)))
        out = pl.pallas_call(
            functools.partial(dropout_only_kernel,
                              dropout_rate=float(dropout_rate), tile_m=tile_m),
            out_shape=jax.ShapeDtypeStruct((m_pad, d_i_pad), jnp.float32),
            grid=(m_pad // tile_m,),
            in_specs=[
                pl.BlockSpec(memory_space=pltpu.MemorySpace.SMEM),     # seed
                pl.BlockSpec((tile_m, d_i_pad), lambda i: (i, 0)),     # x
            ],
            out_specs=pl.BlockSpec((tile_m, d_i_pad), lambda i: (i, 0)),
            compiler_params=pltpu.CompilerParams(
                dimension_semantics=("parallel",)),
        )(seed_arr, x_p)
        return out[:m, :d_i].reshape(b, t, d_i)

    dim_h_o = weights[-1].shape[1]
    d_h_pad = _round_up(dim_h_o, _LANE)

    # Lane-pad + bf16 the streamed input (halves HBM read bytes).
    x_p = jnp.pad(x2d.astype(jnp.bfloat16),
                  ((0, m_pad - m), (0, d_i_pad - d_i)))

    in_specs = [
        pl.BlockSpec(memory_space=pltpu.MemorySpace.SMEM),             # seed
        pl.BlockSpec((tile_m, d_i_pad), lambda i: (i, 0)),             # x tile
    ]
    wb_inputs = []
    flops = 0
    bytes_accessed = x_p.size * 2 + m_pad * d_h_pad * 4
    d_prev_pad = d_i_pad
    for w, bias in zip(weights, biases):
        n_in, n_out = w.shape
        n_in_pad = _round_up(n_in, _LANE)
        n_out_pad = _round_up(n_out, _LANE)
        assert n_in_pad == d_prev_pad, "layer input width mismatch"
        w_p = jnp.pad(w.astype(jnp.bfloat16),
                      ((0, n_in_pad - n_in), (0, n_out_pad - n_out)))
        b_p = jnp.pad(bias.reshape(1, -1).astype(jnp.float32),
                      ((0, 0), (0, n_out_pad - n_out)))
        wb_inputs += [w_p, b_p]
        in_specs += [
            pl.BlockSpec((n_in_pad, n_out_pad), lambda i: (0, 0)),     # W (resident)
            pl.BlockSpec((1, n_out_pad), lambda i: (0, 0)),            # b (resident)
        ]
        flops += 2 * m_pad * n_in_pad * n_out_pad
        bytes_accessed += w_p.size * 2 + b_p.size * 4
        d_prev_pad = n_out_pad

    out = pl.pallas_call(
        functools.partial(fused_prenet_kernel, n_layers=n_layers,
                          dropout_rate=float(dropout_rate), tile_m=tile_m),
        out_shape=jax.ShapeDtypeStruct((m_pad, d_h_pad), jnp.float32),
        grid=(m_pad // tile_m,),
        in_specs=in_specs,
        out_specs=pl.BlockSpec((tile_m, d_h_pad), lambda i: (i, 0)),
        compiler_params=pltpu.CompilerParams(
            dimension_semantics=("parallel",)),
        cost_estimate=pl.CostEstimate(flops=flops, transcendentals=0,
                                      bytes_accessed=bytes_accessed),
    )(seed_arr, x_p, *wb_inputs)

    return out[:m, :dim_h_o].reshape(b, t, dim_h_o)


def init_prenet_params(key, dim_i, dim_h_o, n_layers):
    """PyTorch-Linear-style init: U(-1/sqrt(fan_in), 1/sqrt(fan_in)); W as (in, out)."""
    weights, biases = [], []
    for layer in range(n_layers):
        n_in = dim_i if layer == 0 else dim_h_o
        key, kw, kb = jax.random.split(key, 3)
        bound = 1.0 / jnp.sqrt(jnp.float32(n_in))
        weights.append(jax.random.uniform(kw, (n_in, dim_h_o), jnp.float32,
                                          minval=-bound, maxval=bound))
        biases.append(jax.random.uniform(kb, (dim_h_o,), jnp.float32,
                                         minval=-bound, maxval=bound))
    return weights, biases


def _ref_forward_nodropout(x, weights, biases):
    h = x
    for w, b in zip(weights, biases):
        h = jnp.maximum(jnp.dot(h, w) + b, 0.0)
    return h


# ----------------------------------------------------------------------------
if __name__ == "__main__":
    # Small config consistent with ConfDecoderPreNet
    dim_i, dim_h_o, n_layers, dropout_rate = 32, 32, 2, 0.5
    B, T = 2, 8

    key = jax.random.PRNGKey(0)
    k_x, k_p = jax.random.split(key)
    x = jax.random.normal(k_x, (B, T, dim_i), jnp.float32)
    weights, biases = init_prenet_params(k_p, dim_i, dim_h_o, n_layers)

    # Dropout path (always-on dropout, as in the PyTorch module)
    y = taco2_prenet_forward(x, weights, biases, dropout_rate, seed=1234)
    y = jax.block_until_ready(y)
    assert y.shape == (B, T, dim_h_o), y.shape
    assert bool(jnp.all(jnp.isfinite(y)))

    # Deterministic check of the FC+ReLU chain (p = 0 -> no dropout); bf16 matmul
    # tolerance.
    y_det = jax.block_until_ready(
        taco2_prenet_forward(x, weights, biases, 0.0, seed=0))
    y_ref = _ref_forward_nodropout(x, weights, biases)
    assert jnp.allclose(y_det, y_ref, rtol=5e-2, atol=5e-2), (
        float(jnp.max(jnp.abs(y_det - y_ref))))

    # n_layers == 0 path (pure always-on dropout); with p = 0 it must be identity.
    y0 = jax.block_until_ready(taco2_prenet_forward(x, [], [], dropout_rate, seed=7))
    assert y0.shape == x.shape
    assert bool(jnp.all(jnp.isfinite(y0)))
    y0_id = jax.block_until_ready(taco2_prenet_forward(x, [], [], 0.0, seed=7))
    assert jnp.allclose(y0_id, x, rtol=1e-6, atol=1e-6)

    print("KERNEL_OK")
</pallas_src>

<mosaic_0001>
module attributes {stable_mosaic.version = 11 : i64} {
  func.func @fused_prenet_kernel(%arg0: i32, %arg1: memref<1xi32, #tpu.memory_space<smem>>, %arg2: memref<16x128xbf16, #tpu.memory_space<vmem>>, %arg3: memref<128x128xbf16, #tpu.memory_space<vmem>>, %arg4: memref<1x128xf32, #tpu.memory_space<vmem>>, %arg5: memref<128x128xbf16, #tpu.memory_space<vmem>>, %arg6: memref<1x128xf32, #tpu.memory_space<vmem>>, %arg7: memref<16x128xf32, #tpu.memory_space<vmem>>) attributes {dimension_semantics = [#tpu.dimension_semantics<parallel>], iteration_bounds = array<i64: 1>, scalar_prefetch = 0 : i64, scratch_operands = 0 : i64, tpu.core_type = #tpu.core_type<tc>, window_params = [{transform_indices = @transform_0, window_bounds = array<i64: 1>}, {transform_indices = @transform_1, window_bounds = array<i64: 16, 128>}, {pipeline_mode = #tpu.pipeline_mode<synchronous>, transform_indices = @transform_2, window_bounds = array<i64: 128, 128>}, {pipeline_mode = #tpu.pipeline_mode<synchronous>, transform_indices = @transform_3, window_bounds = array<i64: 1, 128>}, {pipeline_mode = #tpu.pipeline_mode<synchronous>, transform_indices = @transform_4, window_bounds = array<i64: 128, 128>}, {pipeline_mode = #tpu.pipeline_mode<synchronous>, transform_indices = @transform_5, window_bounds = array<i64: 1, 128>}, {transform_indices = @transform_6, window_bounds = array<i64: 16, 128>}]} {
    %c0 = arith.constant 0 : index
    %0 = memref.load %arg1[%c0] : memref<1xi32, #tpu.memory_space<smem>>
    %c16_i32 = arith.constant 16 : i32
    %1 = arith.muli %arg0, %c16_i32 : i32
    %c0_0 = arith.constant 0 : index
    %c0_1 = arith.constant 0 : index
    %2 = vector.load %arg2[%c0_0, %c0_1] : memref<16x128xbf16, #tpu.memory_space<vmem>>, vector<16x128xbf16>
    %c0_2 = arith.constant 0 : index
    %c0_3 = arith.constant 0 : index
    %3 = vector.load %arg3[%c0_2, %c0_3] : memref<128x128xbf16, #tpu.memory_space<vmem>>, vector<128x128xbf16>
    %cst = arith.constant dense<0.000000e+00> : vector<16x128xf32>
    %4 = tpu.matmul %2, %3, %cst {dimension_numbers = #tpu.dot_dimension_numbers<[1], [0], [0], [1], [0, 0, 1, 1], [], []>} : vector<16x128xbf16>, vector<128x128xbf16>, vector<16x128xf32> -> vector<16x128xf32>
    %c0_4 = arith.constant 0 : index
    %c0_5 = arith.constant 0 : index
    %5 = vector.load %arg4[%c0_4, %c0_5] : memref<1x128xf32, #tpu.memory_space<vmem>>, vector<1x128xf32>
    %6 = vector.broadcast %5 : vector<1x128xf32> to vector<16x128xf32>
    %7 = arith.addf %4, %6 : vector<16x128xf32>
    %cst_6 = arith.constant 0.000000e+00 : f32
    %8 = vector.broadcast %cst_6 : f32 to vector<16x128xf32>
    %9 = arith.maximumf %7, %8 : vector<16x128xf32>
    %10 = tpu.iota {dimensions = array<i32: 0>} : vector<16x128xi32>
    %11 = tpu.iota {dimensions = array<i32: 1>} : vector<16x128xi32>
    %12 = vector.broadcast %1 : i32 to vector<16x128xi32>
    %13 = arith.addi %12, %10 : vector<16x128xi32>
    %c128_i32 = arith.constant 128 : i32
    %14 = vector.broadcast %c128_i32 : i32 to vector<16x128xi32>
    %15 = arith.muli %13, %14 : vector<16x128xi32>
    %16 = arith.addi %15, %11 : vector<16x128xi32>
    %c-1640531527_i32 = arith.constant -1640531527 : i32
    %17 = arith.muli %0, %c-1640531527_i32 : i32
    %18 = vector.broadcast %17 : i32 to vector<16x128xi32>
    %19 = arith.addi %16, %18 : vector<16x128xi32>
    %c1_i32 = arith.constant 1 : i32
    %c-2048144789_i32 = arith.constant -2048144789 : i32
    %20 = arith.muli %c1_i32, %c-2048144789_i32 : i32
    %21 = vector.broadcast %20 : i32 to vector<16x128xi32>
    %22 = arith.addi %19, %21 : vector<16x128xi32>
    %c16_i32_7 = arith.constant 16 : i32
    %23 = vector.broadcast %c16_i32_7 : i32 to vector<16x128xi32>
    %24 = arith.shrui %22, %23 : vector<16x128xi32>
    %25 = arith.xori %22, %24 : vector<16x128xi32>
    %c2146121005_i32 = arith.constant 2146121005 : i32
    %26 = vector.broadcast %c2146121005_i32 : i32 to vector<16x128xi32>
    %27 = arith.muli %25, %26 : vector<16x128xi32>
    %c15_i32 = arith.constant 15 : i32
    %28 = vector.broadcast %c15_i32 : i32 to vector<16x128xi32>
    %29 = arith.shrui %27, %28 : vector<16x128xi32>
    %30 = arith.xori %27, %29 : vector<16x128xi32>
    %c-2073254261_i32 = arith.constant -2073254261 : i32
    %31 = vector.broadcast %c-2073254261_i32 : i32 to vector<16x128xi32>
    %32 = arith.muli %30, %31 : vector<16x128xi32>
    %c16_i32_8 = arith.constant 16 : i32
    %33 = vector.broadcast %c16_i32_8 : i32 to vector<16x128xi32>
    %34 = arith.shrui %32, %33 : vector<16x128xi32>
    %35 = arith.xori %32, %34 : vector<16x128xi32>
    %c1_i32_9 = arith.constant 1 : i32
    %36 = vector.broadcast %c1_i32_9 : i32 to vector<16x128xi32>
    %37 = arith.shrui %35, %36 : vector<16x128xi32>
    %c1073741824_i32 = arith.constant 1073741824 : i32
    %38 = vector.broadcast %c1073741824_i32 : i32 to vector<16x128xi32>
    %39 = arith.cmpi sge, %37, %38 : vector<16x128xi32>
    %cst_10 = arith.constant 2.000000e+00 : f32
    %40 = vector.broadcast %cst_10 : f32 to vector<16x128xf32>
    %41 = arith.mulf %9, %40 : vector<16x128xf32>
    %cst_11 = arith.constant 0.000000e+00 : f32
    %42 = vector.broadcast %cst_11 : f32 to vector<16x128xf32>
    %43 = arith.select %39, %41, %42 : vector<16x128xi1>, vector<16x128xf32>
    %44 = arith.truncf %43 : vector<16x128xf32> to vector<16x128xbf16>
    %c0_12 = arith.constant 0 : index
    %c0_13 = arith.constant 0 : index
    %45 = vector.load %arg5[%c0_12, %c0_13] : memref<128x128xbf16, #tpu.memory_space<vmem>>, vector<128x128xbf16>
    %cst_14 = arith.constant dense<0.000000e+00> : vector<16x128xf32>
    %46 = tpu.matmul %44, %45, %cst_14 {dimension_numbers = #tpu.dot_dimension_numbers<[1], [0], [0], [1], [0, 0, 1, 1], [], []>} : vector<16x128xbf16>, vector<128x128xbf16>, vector<16x128xf32> -> vector<16x128xf32>
    %c0_15 = arith.constant 0 : index
    %c0_16 = arith.constant 0 : index
    %47 = vector.load %arg6[%c0_15, %c0_16] : memref<1x128xf32, #tpu.memory_space<vmem>>, vector<1x128xf32>
    %48 = vector.broadcast %47 : vector<1x128xf32> to vector<16x128xf32>
    %49 = arith.addf %46, %48 : vector<16x128xf32>
    %cst_17 = arith.constant 0.000000e+00 : f32
    %50 = vector.broadcast %cst_17 : f32 to vector<16x128xf32>
    %51 = arith.maximumf %49, %50 : vector<16x128xf32>
    %52 = tpu.iota {dimensions = array<i32: 0>} : vector<16x128xi32>
    %53 = tpu.iota {dimensions = array<i32: 1>} : vector<16x128xi32>
    %54 = vector.broadcast %1 : i32 to vector<16x128xi32>
    %55 = arith.addi %54, %52 : vector<16x128xi32>
    %c128_i32_18 = arith.constant 128 : i32
    %56 = vector.broadcast %c128_i32_18 : i32 to vector<16x128xi32>
    %57 = arith.muli %55, %56 : vector<16x128xi32>
    %58 = arith.addi %57, %53 : vector<16x128xi32>
    %c-1640531527_i32_19 = arith.constant -1640531527 : i32
    %59 = arith.muli %0, %c-1640531527_i32_19 : i32
    %60 = vector.broadcast %59 : i32 to vector<16x128xi32>
    %61 = arith.addi %58, %60 : vector<16x128xi32>
    %c2_i32 = arith.constant 2 : i32
    %c-2048144789_i32_20 = arith.constant -2048144789 : i32
    %62 = arith.muli %c2_i32, %c-2048144789_i32_20 : i32
    %63 = vector.broadcast %62 : i32 to vector<16x128xi32>
    %64 = arith.addi %61, %63 : vector<16x128xi32>
    %c16_i32_21 = arith.constant 16 : i32
    %65 = vector.broadcast %c16_i32_21 : i32 to vector<16x128xi32>
    %66 = arith.shrui %64, %65 : vector<16x128xi32>
    %67 = arith.xori %64, %66 : vector<16x128xi32>
    %c2146121005_i32_22 = arith.constant 2146121005 : i32
    %68 = vector.broadcast %c2146121005_i32_22 : i32 to vector<16x128xi32>
    %69 = arith.muli %67, %68 : vector<16x128xi32>
    %c15_i32_23 = arith.constant 15 : i32
    %70 = vector.broadcast %c15_i32_23 : i32 to vector<16x128xi32>
    %71 = arith.shrui %69, %70 : vector<16x128xi32>
    %72 = arith.xori %69, %71 : vector<16x128xi32>
    %c-2073254261_i32_24 = arith.constant -2073254261 : i32
    %73 = vector.broadcast %c-2073254261_i32_24 : i32 to vector<16x128xi32>
    %74 = arith.muli %72, %73 : vector<16x128xi32>
    %c16_i32_25 = arith.constant 16 : i32
    %75 = vector.broadcast %c16_i32_25 : i32 to vector<16x128xi32>
    %76 = arith.shrui %74, %75 : vector<16x128xi32>
    %77 = arith.xori %74, %76 : vector<16x128xi32>
    %c1_i32_26 = arith.constant 1 : i32
    %78 = vector.broadcast %c1_i32_26 : i32 to vector<16x128xi32>
    %79 = arith.shrui %77, %78 : vector<16x128xi32>
    %c1073741824_i32_27 = arith.constant 1073741824 : i32
    %80 = vector.broadcast %c1073741824_i32_27 : i32 to vector<16x128xi32>
    %81 = arith.cmpi sge, %79, %80 : vector<16x128xi32>
    %cst_28 = arith.constant 2.000000e+00 : f32
    %82 = vector.broadcast %cst_28 : f32 to vector<16x128xf32>
    %83 = arith.mulf %51, %82 : vector<16x128xf32>
    %cst_29 = arith.constant 0.000000e+00 : f32
    %84 = vector.broadcast %cst_29 : f32 to vector<16x128xf32>
    %85 = arith.select %81, %83, %84 : vector<16x128xi1>, vector<16x128xf32>
    %c0_30 = arith.constant 0 : index
    %c0_31 = arith.constant 0 : index
    %86 = vector.load %arg7[%c0_30, %c0_31] : memref<16x128xf32, #tpu.memory_space<vmem>>, vector<16x128xf32>
    tpu.vector_store %arg7[%c0_30, %c0_31], %85 {strides = array<i32>} : memref<16x128xf32, #tpu.memory_space<vmem>>, vector<16x128xf32>,
    return
  }
  func.func @transform_0(%arg0: i32) -> i32 {
    %c0_i32 = arith.constant 0 : i32
    %c0_i32_0 = arith.constant 0 : i32
    return %c0_i32 : i32
  }
  func.func @transform_1(%arg0: i32) -> (i32, i32) {
    %c0_i32 = arith.constant 0 : i32
    %c0_i32_0 = arith.constant 0 : i32
    return %arg0, %c0_i32 : i32, i32
  }
  func.func @transform_2(%arg0: i32) -> (i32, i32) {
    %c0_i32 = arith.constant 0 : i32
    %c0_i32_0 = arith.constant 0 : i32
    %c0_i32_1 = arith.constant 0 : i32
    return %c0_i32, %c0_i32_0 : i32, i32
  }
  func.func @transform_3(%arg0: i32) -> (i32, i32) {
    %c0_i32 = arith.constant 0 : i32
    %c0_i32_0 = arith.constant 0 : i32
    %c0_i32_1 = arith.constant 0 : i32
    return %c0_i32, %c0_i32_0 : i32, i32
  }
  func.func @transform_4(%arg0: i32) -> (i32, i32) {
    %c0_i32 = arith.constant 0 : i32
    %c0_i32_0 = arith.constant 0 : i32
    %c0_i32_1 = arith.constant 0 : i32
    return %c0_i32, %c0_i32_0 : i32, i32
  }
  func.func @transform_5(%arg0: i32) -> (i32, i32) {
    %c0_i32 = arith.constant 0 : i32
    %c0_i32_0 = arith.constant 0 : i32
    %c0_i32_1 = arith.constant 0 : i32
    return %c0_i32, %c0_i32_0 : i32, i32
  }
  func.func @transform_6(%arg0: i32) -> (i32, i32) {
    %c0_i32 = arith.constant 0 : i32
    %c0_i32_0 = arith.constant 0 : i32
    return %arg0, %c0_i32 : i32, i32
  }
}

</mosaic_0001>

<llo_original>
// kernel: tpu_custom_call.1
$region0: #{tpu_custom_call.1}
  #allocation0 [shape = 'u32[]', space=smem, size = 0x4, offset = 0x4, fixed_abs, tag = 'smem constant byte address 0x4 - core index']
  #allocation1 [shape = 'u32[144,128]{1,0:T(1,128)}', space=vmem, size = 0x12000, scoped, tag = 'internal scratch']
  #allocation2 [shape = 's32[1]{0:T(128)S(6)}', space=smem, size = 0x200, scoped, tag = 'scoped memory for tpu_custom_call.1']
  %s0 = inlined_call_operand.<no memory space> [shape: s32[1], index: 0, kind: input, shape index: {}]
  %s1 = inlined_call_operand.hbm [shape: bf16[16,128], index: 1, kind: input, shape index: {}]
  %s2 = inlined_call_operand.hbm [shape: bf16[128,128], index: 2, kind: input, shape index: {}]
  %s3 = inlined_call_operand.vmem [shape: f32[1,128], index: 3, kind: input, shape index: {}]
  %s4 = inlined_call_operand.hbm [shape: bf16[128,128], index: 4, kind: input, shape index: {}]
  %s5 = inlined_call_operand.vmem [shape: f32[1,128], index: 5, kind: input, shape index: {}]
  %s6 = inlined_call_operand.hbm [shape: f32[16,128], index: 6, kind: output, shape index: {}]
  %s7 = sld [smem:[#allocation0]]
  $region46: #{tpu_custom_call.1} parent=0
    _
  %s9 = ssub.s32 1, %s7
  %s10 = scalar_select 0, %s9, %s7
  %11 = sst [smem:[#allocation2]] %s0
  $region1: #{tpu_custom_call.1} parent=0
    #allocation3 [shape = 'u8[4096]{0}', space=vmem, size = 0x1000, scoped, tag = 'input window, operand 1, single buffered']
    #allocation4 [shape = 's32[1]{0}', space=sflag, size = 0x4, scoped, tag = 'scoped memory for tpu_custom_call.1']
    #allocation5 [shape = 's32[1]{0}', space=sflag, size = 0x4, scoped, tag = 'scoped memory for tpu_custom_call.1']
    #allocation6 [shape = 'u8[32768]{0}', space=vmem, size = 0x8000, scoped, tag = 'input window, operand 2, single buffered']
    #allocation7 [shape = 's32[1]{0}', space=sflag, size = 0x4, scoped, tag = 'scoped memory for tpu_custom_call.1']
    #allocation8 [shape = 'u8[32768]{0}', space=vmem, size = 0x8000, scoped, tag = 'input window, operand 4, single buffered']
    #allocation9 [shape = 'u8[8192]{0}', space=vmem, size = 0x2000, scoped, tag = 'output window, operand 0, single buffered']
    %12 = vsyncpa [#allocation4], 0
    %13 = vsyncpa [#allocation7], 0
    %14 = vsyncpa [#allocation5], 0
    // Predicated region
    $region2: #{tpu_custom_call.1} parent=1 // pred_check
      _
    $region3: #{tpu_custom_call.1} parent=1 // pred_check_branch
      %16 = sbr.rel (0) target = $region5
    $region4: #{tpu_custom_call.1} parent=1 // pred_region
      _
    $region5: #{tpu_custom_call.1} parent=1 // pred_fallthru
      _
    // Predicated region
    $region6: #{tpu_custom_call.1} parent=1 // pred_check
      _
    $region7: #{tpu_custom_call.1} parent=1 // pred_check_branch
      %18 = sbr.rel (0) target = $region9
    $region8: #{tpu_custom_call.1} parent=1 // pred_region
      %s20 = ssub.s32 128, 128
      %21 = vsyncadd [#allocation4], %s20
      %s22 = sshll.u32 [#allocation3], 4
      %s23 = int_to_ptr.vmem [resolvable:$true] %s22
      %28 = dma.hbm_to_vmem [thread:$0]  %s1, 128, %s23, [#allocation4], 64, 64, 4
    $region9: #{tpu_custom_call.1} parent=1 // pred_fallthru
      _
    // Predicated region
    $region10: #{tpu_custom_call.1} parent=1 // pred_check
      _
    $region11: #{tpu_custom_call.1} parent=1 // pred_check_branch
      %30 = sbr.rel (0) target = $region13
    $region12: #{tpu_custom_call.1} parent=1 // pred_region
      %s32 = ssub.s32 1024, 1024
      %33 = vsyncadd [#allocation7], %s32
      %s34 = sshll.u32 [#allocation6], 4
      %s35 = int_to_ptr.vmem [resolvable:$true] %s34
      %40 = dma.hbm_to_vmem [thread:$0]  %s2, 1024, %s35, [#allocation7], 64, 64, 4
    $region13: #{tpu_custom_call.1} parent=1 // pred_fallthru
      _
    // Predicated region
    $region14: #{tpu_custom_call.1} parent=1 // pred_check
      _
    $region15: #{tpu_custom_call.1} parent=1 // pred_check_branch
      %42 = sbr.rel (0) target = $region17
    $region16: #{tpu_custom_call.1} parent=1 // pred_region
      _
    $region17: #{tpu_custom_call.1} parent=1 // pred_fallthru
      _
    // Predicated region
    $region18: #{tpu_custom_call.1} parent=1 // pred_check
      _
    $region19: #{tpu_custom_call.1} parent=1 // pred_check_branch
      %44 = sbr.rel (0) target = $region21
    $region20: #{tpu_custom_call.1} parent=1 // pred_region
      %s46 = ssub.s32 1024, 1024
      %47 = vsyncadd [#allocation7], %s46
      %s48 = sshll.u32 [#allocation8], 4
      %s49 = int_to_ptr.vmem [resolvable:$true] %s48
      %54 = dma.hbm_to_vmem [thread:$0]  %s4, 1024, %s49, [#allocation7], 64, 64, 4
    $region21: #{tpu_custom_call.1} parent=1 // pred_fallthru
      _
    // Predicated region
    $region22: #{tpu_custom_call.1} parent=1 // pred_check
      _
    $region23: #{tpu_custom_call.1} parent=1 // pred_check_branch
      %56 = sbr.rel (0) target = $region25
    $region24: #{tpu_custom_call.1} parent=1 // pred_region
      _
    $region25: #{tpu_custom_call.1} parent=1 // pred_fallthru
      _
    // Predicated region
    $region26: #{tpu_custom_call.1} parent=1 // pred_check
      _
    $region27: #{tpu_custom_call.1} parent=1 // pred_check_branch
      %58 = sbr.rel (0) target = $region29
    $region28: #{tpu_custom_call.1} parent=1 // pred_region
      %59 = dma.done [#allocation4], 128
    $region29: #{tpu_custom_call.1} parent=1 // pred_fallthru
      _
    // Predicated region
    $region30: #{tpu_custom_call.1} parent=1 // pred_check
      _
    $region31: #{tpu_custom_call.1} parent=1 // pred_check_branch
      %61 = sbr.rel (0) target = $region33
    $region32: #{tpu_custom_call.1} parent=1 // pred_region
      %62 = dma.done [#allocation7], 1024
    $region33: #{tpu_custom_call.1} parent=1 // pred_fallthru
      _
    // Predicated region
    $region34: #{tpu_custom_call.1} parent=1 // pred_check
      _
    $region35: #{tpu_custom_call.1} parent=1 // pred_check_branch
      %64 = sbr.rel (0) target = $region37
    $region36: #{tpu_custom_call.1} parent=1 // pred_region
      %65 = dma.done [#allocation7], 1024
    $region37: #{tpu_custom_call.1} parent=1 // pred_fallthru
      _
    %s67 = sld [smem:[#allocation2]]
    %s68 = smul.u32 0, 16
    %v69 = vld [vmem:[#allocation3] sm:$0xf]
    %v70 = vld [vmem:[#allocation3 + $0x4] sm:$0xf]
    %v71 = vld [vmem:[#allocation6] sm:$0xf]
    %v72 = vld [vmem:[#allocation6 + $0x4] sm:$0xf]
    %v73 = vld [vmem:[#allocation6 + $0x8] sm:$0xf]
    %v74 = vld [vmem:[#allocation6 + $0xc] sm:$0xf]
    %v75 = vld [vmem:[#allocation6 + $0x10] sm:$0xf]
    %v76 = vld [vmem:[#allocation6 + $0x14] sm:$0xf]
    %v77 = vld [vmem:[#allocation6 + $0x18] sm:$0xf]
    %v78 = vld [vmem:[#allocation6 + $0x1c] sm:$0xf]
    %v79 = vld [vmem:[#allocation6 + $0x20] sm:$0xf]
    %v80 = vld [vmem:[#allocation6 + $0x24] sm:$0xf]
    %v81 = vld [vmem:[#allocation6 + $0x28] sm:$0xf]
    %v82 = vld [vmem:[#allocation6 + $0x2c] sm:$0xf]
    %v83 = vld [vmem:[#allocation6 + $0x30] sm:$0xf]
    %v84 = vld [vmem:[#allocation6 + $0x34] sm:$0xf]
    %v85 = vld [vmem:[#allocation6 + $0x38] sm:$0xf]
    %v86 = vld [vmem:[#allocation6 + $0x3c] sm:$0xf]
    %v87 = vld [vmem:[%s3] sm:$0x1]
    %v89 = vlaneseq
    %v90 = vshrl.u32 %v89, 7
    %v91 = vsub.s32 0, %v90
    %v92 = vrot.slane %v87, %v91
    %v96 = vunpack.c.l.b16 %v69
    %v97 = vunpack.c.l.b16 %v70
    %v98 = vpack.c.b16 %v97, %v96
    %v116 = vunpack.c.l.b16 %v71
    %v117 = vunpack.c.l.b16 %v72
    %v118 = vunpack.c.l.b16 %v73
    %v119 = vunpack.c.l.b16 %v74
    %v120 = vunpack.c.l.b16 %v75
    %v121 = vunpack.c.l.b16 %v76
    %v122 = vunpack.c.l.b16 %v77
    %v123 = vunpack.c.l.b16 %v78
    %v124 = vunpack.c.l.b16 %v79
    %v125 = vunpack.c.l.b16 %v80
    %v126 = vunpack.c.l.b16 %v81
    %v127 = vunpack.c.l.b16 %v82
    %v128 = vunpack.c.l.b16 %v83
    %v129 = vunpack.c.l.b16 %v84
    %v130 = vunpack.c.l.b16 %v85
    %v131 = vunpack.c.l.b16 %v86
    %v132 = vpack.c.b16 %v117, %v116
    %v133 = vpack.c.b16 %v119, %v118
    %v134 = vpack.c.b16 %v121, %v120
    %v135 = vpack.c.b16 %v123, %v122
    %v136 = vpack.c.b16 %v125, %v124
    %v137 = vpack.c.b16 %v127, %v126
    %v138 = vpack.c.b16 %v129, %v128
    %v139 = vpack.c.b16 %v131, %v130
    %148 = vmatprep.subr.bf16.mxu0 0
    %149 = vmatpush1.bf16.msra.mxu0 %v132
    %150 = vmatprep.subr.bf16.mxu0 0
    %151 = vmatpush1.bf16.msra.mxu0 %v133
    %152 = vmatprep.subr.bf16.mxu0 0
    %153 = vmatpush1.bf16.msra.mxu0 %v134
    %154 = vmatprep.subr.bf16.mxu0 0
    %155 = vmatpush1.bf16.msra.mxu0 %v135
    %156 = vmatprep.subr.bf16.mxu0 0
    %157 = vmatpush1.bf16.msra.mxu0 %v136
    %158 = vmatprep.subr.bf16.mxu0 0
    %159 = vmatpush1.bf16.msra.mxu0 %v137
    %160 = vmatprep.subr.bf16.mxu0 0
    %161 = vmatpush1.bf16.msra.mxu0 %v138
    %162 = vmatprep.subr.bf16.mxu0 0
    %163 = vmatpush1.bf16.msra.mxu0 %v139
    %164 = vmatprep.subr.bf16.mxu0 0
    %165 = vmatpush1.bf16.msra.mxu0 0
    %166 = vmatprep.subr.bf16.mxu0 0
    %167 = vmatpush1.bf16.msra.mxu0 0
    %168 = vmatprep.subr.bf16.mxu0 0
    %169 = vmatpush1.bf16.msra.mxu0 0
    %170 = vmatprep.subr.bf16.mxu0 0
    %171 = vmatpush1.bf16.msra.mxu0 0
    %172 = vmatprep.subr.bf16.mxu0 0
    %173 = vmatpush1.bf16.msra.mxu0 0
    %174 = vmatprep.subr.bf16.mxu0 0
    %175 = vmatpush1.bf16.msra.mxu0 0
    %176 = vmatprep.subr.bf16.mxu0 0
    %177 = vmatpush1.bf16.msra.mxu0 0
    %178 = vmatprep.subr.bf16.mxu0 0
    %179 = vmatpush1.bf16.msra.mxu0 0
    %180 = vmatprep.mubr.bf16.mxu0 0
    %181 = vmatmul.mubr.bf16.gmra.mrb[0].mxu0 %v98
    %v182 = vpop.f32.mrb[0].mxu0
    %v183 = vadd.f32 %v92, %v182
    %v184 = vpop.f32.mrb[0].mxu0
    %v185 = vpop.f32.mrb[0].mxu0
    %v186 = vadd.f32 %v92, %v185
    %v187 = vpop.f32.mrb[0].mxu0
    %188 = vdwg.mxu0
    %v189 = vmax.f32 %v183, 0.0
    %v190 = vmax.f32 %v186, 0.0
    %v191 = vlaneseq
    %v192 = vshrl.u32 %v191, 7
    %v193 = vadd.s32 %v192, 8
    %v194 = vlaneseq
    %v195 = vand.u32 %v194, 127
    %v196 = vstv %s68
    %v197 = vadd.s32 %v196, %v192
    %v198 = vadd.s32 %v196, %v193
    %v199 = vmul.u32 %v197, 128
    %v200 = vmul.u32 %v198, 128
    %v201 = vadd.s32 %v199, %v195
    %v202 = vadd.s32 %v200, %v195
    %s203 = smul.u32 %s67, 2654435769
    %v204 = vstv %s203
    %v205 = vadd.s32 %v201, %v204
    %v206 = vadd.s32 %v202, %v204
    %v207 = vadd.s32 %v205, 2246822507
    %v208 = vadd.s32 %v206, 2246822507
    %v209 = vshrl.u32 %v207, 16
    %v210 = vshrl.u32 %v208, 16
    %v211 = vxor.u32 %v207, %v209
    %v212 = vxor.u32 %v208, %v210
    %v213 = vmul.u32 %v211, 2146121005
    %v214 = vmul.u32 %v212, 2146121005
    %v215 = vshrl.u32 %v213, 15
    %v216 = vshrl.u32 %v214, 15
    %v217 = vxor.u32 %v213, %v215
    %v218 = vxor.u32 %v214, %v216
    %v219 = vmul.u32 %v217, 2221713035
    %v220 = vmul.u32 %v218, 2221713035
    %v221 = vshrl.u32 %v219, 16
    %v222 = vshrl.u32 %v220, 16
    %v223 = vxor.u32 %v219, %v221
    %v224 = vxor.u32 %v220, %v222
    %v225 = vshrl.u32 %v223, 1
    %v226 = vshrl.u32 %v224, 1
    %vm227 = vcmp.ge.s32.totalorder %v225, 1073741824
    %vm228 = vcmp.ge.s32.totalorder %v226, 1073741824
    %v229 = vmul.f32 %v189, 2.0
    %v230 = vmul.f32 %v190, 2.0
    %v231 = vsel %vm227, %v229, 0.0
    %v232 = vsel %vm228, %v230, 0.0
    %v233 = vpack.c.bf16 %v232, %v231
    %v234 = vld [vmem:[#allocation8] sm:$0xf]
    %v235 = vld [vmem:[#allocation8 + $0x4] sm:$0xf]
    %v236 = vld [vmem:[#allocation8 + $0x8] sm:$0xf]
    %v237 = vld [vmem:[#allocation8 + $0xc] sm:$0xf]
    %v238 = vld [vmem:[#allocation8 + $0x10] sm:$0xf]
    %v239 = vld [vmem:[#allocation8 + $0x14] sm:$0xf]
    %v240 = vld [vmem:[#allocation8 + $0x18] sm:$0xf]
    %v241 = vld [vmem:[#allocation8 + $0x1c] sm:$0xf]
    %v242 = vld [vmem:[#allocation8 + $0x20] sm:$0xf]
    %v243 = vld [vmem:[#allocation8 + $0x24] sm:$0xf]
    %v244 = vld [vmem:[#allocation8 + $0x28] sm:$0xf]
    %v245 = vld [vmem:[#allocation8 + $0x2c] sm:$0xf]
    %v246 = vld [vmem:[#allocation8 + $0x30] sm:$0xf]
    %v247 = vld [vmem:[#allocation8 + $0x34] sm:$0xf]
    %v248 = vld [vmem:[#allocation8 + $0x38] sm:$0xf]
    %v249 = vld [vmem:[#allocation8 + $0x3c] sm:$0xf]
    %v250 = vld [vmem:[%s5] sm:$0x1]
    %v252 = vlaneseq
    %v253 = vshrl.u32 %v252, 7
    %v254 = vsub.s32 0, %v253
    %v255 = vrot.slane %v250, %v254
    %v273 = vunpack.c.l.b16 %v234
    %v274 = vunpack.c.l.b16 %v235
    %v275 = vunpack.c.l.b16 %v236
    %v276 = vunpack.c.l.b16 %v237
    %v277 = vunpack.c.l.b16 %v238
    %v278 = vunpack.c.l.b16 %v239
    %v279 = vunpack.c.l.b16 %v240
    %v280 = vunpack.c.l.b16 %v241
    %v281 = vunpack.c.l.b16 %v242
    %v282 = vunpack.c.l.b16 %v243
    %v283 = vunpack.c.l.b16 %v244
    %v284 = vunpack.c.l.b16 %v245
    %v285 = vunpack.c.l.b16 %v246
    %v286 = vunpack.c.l.b16 %v247
    %v287 = vunpack.c.l.b16 %v248
    %v288 = vunpack.c.l.b16 %v249
    %v289 = vpack.c.b16 %v274, %v273
    %v290 = vpack.c.b16 %v276, %v275
    %v291 = vpack.c.b16 %v278, %v277
    %v292 = vpack.c.b16 %v280, %v279
    %v293 = vpack.c.b16 %v282, %v281
    %v294 = vpack.c.b16 %v284, %v283
    %v295 = vpack.c.b16 %v286, %v285
    %v296 = vpack.c.b16 %v288, %v287
    %305 = vmatprep.subr.bf16.mxu0 0
    %306 = vmatpush1.bf16.msra.mxu0 %v289
    %307 = vmatprep.subr.bf16.mxu0 0
    %308 = vmatpush1.bf16.msra.mxu0 %v290
    %309 = vmatprep.subr.bf16.mxu0 0
    %310 = vmatpush1.bf16.msra.mxu0 %v291
    %311 = vmatprep.subr.bf16.mxu0 0
    %312 = vmatpush1.bf16.msra.mxu0 %v292
    %313 = vmatprep.subr.bf16.mxu0 0
    %314 = vmatpush1.bf16.msra.mxu0 %v293
    %315 = vmatprep.subr.bf16.mxu0 0
    %316 = vmatpush1.bf16.msra.mxu0 %v294
    %317 = vmatprep.subr.bf16.mxu0 0
    %318 = vmatpush1.bf16.msra.mxu0 %v295
    %319 = vmatprep.subr.bf16.mxu0 0
    %320 = vmatpush1.bf16.msra.mxu0 %v296
    %321 = vmatprep.subr.bf16.mxu0 0
    %322 = vmatpush1.bf16.msra.mxu0 0
    %323 = vmatprep.subr.bf16.mxu0 0
    %324 = vmatpush1.bf16.msra.mxu0 0
    %325 = vmatprep.subr.bf16.mxu0 0
    %326 = vmatpush1.bf16.msra.mxu0 0
    %327 = vmatprep.subr.bf16.mxu0 0
    %328 = vmatpush1.bf16.msra.mxu0 0
    %329 = vmatprep.subr.bf16.mxu0 0
    %330 = vmatpush1.bf16.msra.mxu0 0
    %331 = vmatprep.subr.bf16.mxu0 0
    %332 = vmatpush1.bf16.msra.mxu0 0
    %333 = vmatprep.subr.bf16.mxu0 0
    %334 = vmatpush1.bf16.msra.mxu0 0
    %335 = vmatprep.subr.bf16.mxu0 0
    %336 = vmatpush1.bf16.msra.mxu0 0
    %337 = vmatprep.mubr.bf16.mxu0 0
    %338 = vmatmul.mubr.bf16.gmra.mrb[0].mxu0 %v233
    %v339 = vpop.f32.mrb[0].mxu0
    %v340 = vadd.f32 %v255, %v339
    %v341 = vpop.f32.mrb[0].mxu0
    %v342 = vpop.f32.mrb[0].mxu0
    %v343 = vadd.f32 %v255, %v342
    %v344 = vpop.f32.mrb[0].mxu0
    %345 = vdwg.mxu0
    %v346 = vmax.f32 %v340, 0.0
    %v347 = vmax.f32 %v343, 0.0
    %v348 = vadd.s32 %v205, 198677718
    %v349 = vadd.s32 %v206, 198677718
    %v350 = vshrl.u32 %v348, 16
    %v351 = vshrl.u32 %v349, 16
    %v352 = vxor.u32 %v348, %v350
    %v353 = vxor.u32 %v349, %v351
    %v354 = vmul.u32 %v352, 2146121005
    %v355 = vmul.u32 %v353, 2146121005
    %v356 = vshrl.u32 %v354, 15
    %v357 = vshrl.u32 %v355, 15
    %v358 = vxor.u32 %v354, %v356
    %v359 = vxor.u32 %v355, %v357
    %v360 = vmul.u32 %v358, 2221713035
    %v361 = vmul.u32 %v359, 2221713035
    %v362 = vshrl.u32 %v360, 16
    %v363 = vshrl.u32 %v361, 16
    %v364 = vxor.u32 %v360, %v362
    %v365 = vxor.u32 %v361, %v363
    %v366 = vshrl.u32 %v364, 1
    %v367 = vshrl.u32 %v365, 1
    %vm368 = vcmp.ge.s32.totalorder %v366, 1073741824
    %vm369 = vcmp.ge.s32.totalorder %v367, 1073741824
    %v370 = vmul.f32 %v346, 2.0
    %v371 = vmul.f32 %v347, 2.0
    %v372 = vsel %vm368, %v370, 0.0
    %v373 = vsel %vm369, %v371, 0.0
    %374 = vst [vmem:[#allocation9] sm:$0xff] %v372
    %375 = vst [vmem:[#allocation9 + $0x8] sm:$0xff] %v373
    // Predicated region
    $region38: #{tpu_custom_call.1} parent=1 // pred_check
      _
    $region39: #{tpu_custom_call.1} parent=1 // pred_check_branch
      %377 = sbr.rel (0) target = $region41
    $region40: #{tpu_custom_call.1} parent=1 // pred_region
      %s379 = ssub.s32 256, 256
      %380 = vsyncadd [#allocation5], %s379
      %s381 = sshll.u32 [#allocation9], 4
      %s382 = int_to_ptr.vmem [resolvable:$true] %s381
      %387 = dma.vmem_to_hbm [thread:$0]  %s382, 256, %s6, [#allocation5], 128, 128, 8
    $region41: #{tpu_custom_call.1} parent=1 // pred_fallthru
      _
    // Predicated region
    $region42: #{tpu_custom_call.1} parent=1 // pred_check
      _
    $region43: #{tpu_custom_call.1} parent=1 // pred_check_branch
      %389 = sbr.rel (0) target = $region45
    $region44: #{tpu_custom_call.1} parent=1 // pred_region
      %390 = dma.done [#allocation5], 256
    $region45: #{tpu_custom_call.1} parent=1 // pred_fallthru
      _
    %391 = vsyncpa [#allocation4], 1
    %392 = vsyncpa [#allocation7], 1
    %393 = vsyncpa [#allocation5], 1

</llo_original>
